<compile_context>
chip_gen: v5e
topology: v5e:2x2
jax: 0.10.0
libtpu: 0.0.40
codegen_flags: <defaults>
</compile_context>

<pallas_src>
import jax
import jax.numpy as jnp
import numpy as np
from jax.experimental import pallas as pl
from jax.experimental.pallas import tpu as pltpu


def _objective_kernel(x_ref, at_ref, b_ref, loss_ref, acc_ref):
    """One M-tile of   loss = || x^T @ A^T - b^T ||^2.

    x_ref   : (1, P)       resident across the whole grid
    at_ref  : (P, TILE_M)  streamed (software-pipelined) from HBM
    b_ref   : (1, TILE_M)  streamed from HBM
    loss_ref: (1, 1)       f32 output, written on the last grid step
    acc_ref : (1, 1)       f32 VMEM scratch accumulator
    """
    i = pl.program_id(0)

    @pl.when(i == 0)
    def _init():
        acc_ref[...] = jnp.zeros_like(acc_ref)

    # Lane-dense residual row: (1, P) @ (P, TILE_M) -> (1, TILE_M) on the MXU,
    # accumulated in f32, then subtract b.
    r = jnp.dot(x_ref[...], at_ref[...],
                preferred_element_type=jnp.float32) - b_ref[...]
    # Squared-residual lane reduce (XLU) into the resident accumulator.
    acc_ref[...] += jnp.sum(r * r, axis=-1, keepdims=True)

    @pl.when(i == pl.num_programs(0) - 1)
    def _finalize():
        loss_ref[...] = acc_ref[...]


def _pad_last_to_multiple(arr, multiple):
    size = arr.shape[-1]
    pad = (-size) % multiple
    if pad == 0:
        return arr
    pads = [(0, 0)] * (arr.ndim - 1) + [(0, pad)]
    return jnp.pad(arr, pads)  # zero rows of A / zero entries of b add 0 loss


def quadratic_objective(A, b, *, tile_m=256, stream_dtype=jnp.float32):
    """Return objective(x) = ||A @ x - b||^2 backed by a tiled Pallas TPU kernel.

    VMEM budget per step ~ 2 (double-buffer) * P * tile_m * itemsize for A^T
    plus x/b/scratch; tile_m=256 with P=128 is ~256 KiB, far under the 64 MiB
    physical VMEM of v7x.  For large P, size tile_m against that budget
    (and consider stream_dtype=jnp.bfloat16 to halve HBM traffic).
    """
    M, P = A.shape

    # Hoisted out of the per-call objective: cast + transpose + pad exactly once.
    a_t = _pad_last_to_multiple(jnp.asarray(A, dtype=stream_dtype).T, tile_m)   # (P, Mp)
    b_row = _pad_last_to_multiple(
        jnp.asarray(b, dtype=jnp.float32).reshape(1, M), tile_m)                # (1, Mp)
    m_padded = a_t.shape[-1]
    grid_m = m_padded // tile_m

    cost = pl.CostEstimate(
        flops=2 * m_padded * P,
        transcendentals=0,
        bytes_accessed=int(a_t.size * a_t.dtype.itemsize
                           + b_row.size * 4 + P * 4 + 4),
    )

    call = pl.pallas_call(
        _objective_kernel,
        out_shape=jax.ShapeDtypeStruct((1, 1), jnp.float32),
        grid_spec=pltpu.PrefetchScalarGridSpec(
            num_scalar_prefetch=0,
            grid=(grid_m,),
            in_specs=[
                pl.BlockSpec((1, P), lambda i: (0, 0)),        # x (resident)
                pl.BlockSpec((P, tile_m), lambda i: (0, i)),   # A^T (streamed)
                pl.BlockSpec((1, tile_m), lambda i: (0, i)),   # b   (streamed)
            ],
            out_specs=pl.BlockSpec((1, 1), lambda i: (0, 0)),
            scratch_shapes=[pltpu.VMEM((1, 1), jnp.float32)],
        ),
        compiler_params=pltpu.CompilerParams(
            dimension_semantics=("arbitrary",),   # grid axis is a reduction
        ),
        cost_estimate=cost,
    )

    def objective(x):
        x_row = jnp.asarray(x, dtype=stream_dtype).reshape(1, P)
        loss = call(x_row, a_t, b_row)
        return loss[0, 0]

    return objective


class Model:
    """JAX/Pallas port of the PyTorch `Model`."""

    def __init__(self, parameter_size: int) -> None:
        x_initial = jnp.zeros(parameter_size + 1, dtype=jnp.float32)
        x_initial = x_initial.at[0].set(1.0)
        self.x = x_initial  # trainable parameter in the original module

    def get_x(self):
        return jax.device_get(self.x).copy()

    def forward(self, objective):
        difference = objective(self.x)
        loss = difference
        return (loss, difference)


if __name__ == "__main__":
    # Small, TPU-aligned shapes: parameter_size + 1 = 128 lanes; M = 1024
    # residual rows streamed in 256-row tiles (4 pipelined grid steps).
    parameter_size = 127
    P = parameter_size + 1
    M = 1024
    TILE_M = 256

    key = jax.random.PRNGKey(0)
    kA, kb = jax.random.split(key)
    A = jax.random.normal(kA, (M, P), dtype=jnp.float32)
    b = jax.random.normal(kb, (M,), dtype=jnp.float32)

    model = Model(parameter_size)
    objective = quadratic_objective(A, b, tile_m=TILE_M)

    loss, difference = model.forward(objective)
    loss = jax.block_until_ready(loss)
    difference = jax.block_until_ready(difference)

    # Reference in float64 numpy (avoids TPU matmul-precision ambiguity).
    A64 = np.asarray(A, dtype=np.float64)
    b64 = np.asarray(b, dtype=np.float64)
    x64 = np.asarray(model.x, dtype=np.float64)
    r_ref = A64 @ x64 - b64
    loss_ref = float(np.sum(r_ref * r_ref))

    assert np.allclose(float(loss), loss_ref, rtol=1e-4, atol=1e-2), (
        float(loss), loss_ref)
    assert np.allclose(float(loss), float(difference))

    print("KERNEL_OK")
</pallas_src>

<mosaic_0001>
module attributes {stable_mosaic.version = 11 : i64} {
  func.func @_objective_kernel(%arg0: i32, %arg1: memref<1x128xf32, #tpu.memory_space<vmem>>, %arg2: memref<128x256xf32, #tpu.memory_space<vmem>>, %arg3: memref<1x256xf32, #tpu.memory_space<vmem>>, %arg4: memref<1x1xf32, #tpu.memory_space<vmem>>, %arg5: memref<1x1xf32, #tpu.memory_space<vmem>>) attributes {dimension_semantics = [#tpu.dimension_semantics<arbitrary>], iteration_bounds = array<i64: 4>, scalar_prefetch = 0 : i64, scratch_operands = 1 : i64, tpu.core_type = #tpu.core_type<tc>, window_params = [{pipeline_mode = #tpu.pipeline_mode<synchronous>, transform_indices = @transform_0, window_bounds = array<i64: 1, 128>}, {transform_indices = @transform_1, window_bounds = array<i64: 128, 256>}, {transform_indices = @transform_2, window_bounds = array<i64: 1, 256>}, {pipeline_mode = #tpu.pipeline_mode<synchronous>, transform_indices = @transform_3, window_bounds = array<i64: 1, 1>}]} {
    %c0_i32 = arith.constant 0 : i32
    %0 = arith.cmpi eq, %arg0, %c0_i32 : i32
    %1 = arith.extui %0 : i1 to i32
    %c0_i32_0 = arith.constant 0 : i32
    %2 = arith.cmpi ne, %1, %c0_i32_0 : i32
    scf.if %2 {
      %cst_12 = arith.constant 0.000000e+00 : f32
      %17 = vector.broadcast %cst_12 : f32 to vector<1x1xf32>
      %c0_13 = arith.constant 0 : index
      %c0_14 = arith.constant 0 : index
      %18 = vector.load %arg5[%c0_13, %c0_14] : memref<1x1xf32, #tpu.memory_space<vmem>>, vector<1x1xf32>
      tpu.vector_store %arg5[%c0_13, %c0_14], %17 {strides = array<i32>} : memref<1x1xf32, #tpu.memory_space<vmem>>, vector<1x1xf32>,
    } else {
    }
    %c0 = arith.constant 0 : index
    %c0_1 = arith.constant 0 : index
    %3 = vector.load %arg1[%c0, %c0_1] : memref<1x128xf32, #tpu.memory_space<vmem>>, vector<1x128xf32>
    %c0_2 = arith.constant 0 : index
    %c0_3 = arith.constant 0 : index
    %4 = vector.load %arg2[%c0_2, %c0_3] : memref<128x256xf32, #tpu.memory_space<vmem>>, vector<128x256xf32>
    %cst = arith.constant dense<0.000000e+00> : vector<1x256xf32>
    %5 = tpu.matmul %3, %4, %cst {dimension_numbers = #tpu.dot_dimension_numbers<[1], [0], [0], [1], [0, 0, 1, 1], [], []>} : vector<1x128xf32>, vector<128x256xf32>, vector<1x256xf32> -> vector<1x256xf32>
    %c0_4 = arith.constant 0 : index
    %c0_5 = arith.constant 0 : index
    %6 = vector.load %arg3[%c0_4, %c0_5] : memref<1x256xf32, #tpu.memory_space<vmem>>, vector<1x256xf32>
    %7 = arith.subf %5, %6 : vector<1x256xf32>
    %c0_6 = arith.constant 0 : index
    %c0_7 = arith.constant 0 : index
    %8 = vector.load %arg5[%c0_6, %c0_7] : memref<1x1xf32, #tpu.memory_space<vmem>>, vector<1x1xf32>
    %9 = arith.mulf %7, %7 : vector<1x256xf32>
    %cst_8 = arith.constant dense<0.000000e+00> : vector<1xf32>
    %10 = vector.multi_reduction <add>, %9, %cst_8 [1] : vector<1x256xf32> to vector<1xf32>
    %11 = vector.shape_cast %10 : vector<1xf32> to vector<1x1xf32>
    %12 = arith.addf %8, %11 : vector<1x1xf32>
    %c0_9 = arith.constant 0 : index
    %c0_10 = arith.constant 0 : index
    %13 = vector.load %arg5[%c0_9, %c0_10] : memref<1x1xf32, #tpu.memory_space<vmem>>, vector<1x1xf32>
    tpu.vector_store %arg5[%c0_9, %c0_10], %12 {strides = array<i32>} : memref<1x1xf32, #tpu.memory_space<vmem>>, vector<1x1xf32>,
    %c3_i32 = arith.constant 3 : i32
    %14 = arith.cmpi eq, %arg0, %c3_i32 : i32
    %15 = arith.extui %14 : i1 to i32
    %c0_i32_11 = arith.constant 0 : i32
    %16 = arith.cmpi ne, %15, %c0_i32_11 : i32
    scf.if %16 {
      %c0_12 = arith.constant 0 : index
      %c0_13 = arith.constant 0 : index
      %17 = vector.load %arg5[%c0_12, %c0_13] : memref<1x1xf32, #tpu.memory_space<vmem>>, vector<1x1xf32>
      %c0_14 = arith.constant 0 : index
      %c0_15 = arith.constant 0 : index
      %18 = vector.load %arg4[%c0_14, %c0_15] : memref<1x1xf32, #tpu.memory_space<vmem>>, vector<1x1xf32>
      tpu.vector_store %arg4[%c0_14, %c0_15], %17 {strides = array<i32>} : memref<1x1xf32, #tpu.memory_space<vmem>>, vector<1x1xf32>,
    } else {
    }
    return
  }
  func.func @transform_0(%arg0: i32) -> (i32, i32) {
    %c0_i32 = arith.constant 0 : i32
    %c0_i32_0 = arith.constant 0 : i32
    %c0_i32_1 = arith.constant 0 : i32
    return %c0_i32, %c0_i32_0 : i32, i32
  }
  func.func @transform_1(%arg0: i32) -> (i32, i32) {
    %c0_i32 = arith.constant 0 : i32
    %c0_i32_0 = arith.constant 0 : i32
    return %c0_i32, %arg0 : i32, i32
  }
  func.func @transform_2(%arg0: i32) -> (i32, i32) {
    %c0_i32 = arith.constant 0 : i32
    %c0_i32_0 = arith.constant 0 : i32
    return %c0_i32, %arg0 : i32, i32
  }
  func.func @transform_3(%arg0: i32) -> (i32, i32) {
    %c0_i32 = arith.constant 0 : i32
    %c0_i32_0 = arith.constant 0 : i32
    %c0_i32_1 = arith.constant 0 : i32
    return %c0_i32, %c0_i32_0 : i32, i32
  }
}

</mosaic_0001>

<llo_original>
// kernel: tpu_custom_call.1
$region0: #{tpu_custom_call.1}
  #allocation0 [shape = 'u32[]', space=smem, size = 0x4, offset = 0x4, fixed_abs, tag = 'smem constant byte address 0x4 - core index']
  #allocation1 [shape = 'u32[72,128]{1,0:T(1,128)}', space=vmem, size = 0x9000, scoped, tag = 'internal scratch']
  #allocation2 [shape = 'f32[1,1]{1,0:T(1,128)}', space=vmem, size = 0x200, scoped, tag = 'scratch operand']
  %s0 = inlined_call_operand.hbm [shape: f32[1,128], index: 0, kind: input, shape index: {}]
  %s1 = inlined_call_operand.hbm [shape: f32[128,1024], index: 1, kind: input, shape index: {}]
  %s2 = inlined_call_operand.hbm [shape: f32[1,1024], index: 2, kind: input, shape index: {}]
  %s3 = inlined_call_operand.hbm [shape: f32[1,1], index: 3, kind: output, shape index: {}]
  %s4 = sld [smem:[#allocation0]]
  $region65: #{tpu_custom_call.1} parent=0
    _
  %s6 = ssub.s32 1, %s4
  %s7 = scalar_select 0, %s6, %s4
  $region1: #{tpu_custom_call.1} parent=0
    #allocation3 [shape = 'u8[512]{0}', space=vmem, size = 0x400, scoped, tag = 'input window, operand 0, single buffered']
    #allocation4 [shape = 's32[2]{0}', space=sflag, size = 0x8, scoped, tag = 'scoped memory for tpu_custom_call.1']
    #allocation5 [shape = 's32[2]{0}', space=sflag, size = 0x8, scoped, tag = 'scoped memory for tpu_custom_call.1']
    #allocation6 [shape = 'u8[262144]{0}', space=vmem, size = 0x40000, scoped, tag = 'input window, operand 1']
    #allocation7 [shape = 's32[2]{0}', space=sflag, size = 0x8, scoped, tag = 'scoped memory for tpu_custom_call.1']
    #allocation8 [shape = 'u8[2048]{0}', space=vmem, size = 0x800, scoped, tag = 'input window, operand 2']
    #allocation9 [shape = 'u8[512]{0}', space=vmem, size = 0x400, scoped, tag = 'output window, operand 0, single buffered']
    %8 = vsyncpa [#allocation4], 0
    %9 = vsyncpa [#allocation7], 0
    %s10 = scalar_lea.sflag [#allocation7], 1
    %11 = vsyncpa %s10, 0
    %12 = vsyncpa [#allocation5], 0
    loop: start=0, step=1, limit=6
    $region2: #{tpu_custom_call.1} parent=1 // loop_pre_header
      _
    $region3: #{tpu_custom_call.1} parent=1 // loop_header
      %s14 = sphi 0, %s18
      %p15 = scmp.ge.s32.totalorder %s14, 6
      %s22 = sphi 0, %s22
      %s24 = sphi 0, %s22
      %s25 = sphi 0, %s24
      %s39 = sphi 0, %s25
      %s45 = sphi 0, %s47
      %s48 = sphi 0, %s45
      %s49 = sphi 0, %s48
      %s65 = sphi 0, %s49
      %s71 = sphi 0, %s73
      %s74 = sphi 0, %s71
      %s75 = sphi 0, %s74
      %s91 = sphi 0, %s75
      %s95 = sphi 0, %s95
      %s97 = sphi 0, %s95
      %s98 = sphi 0, %s97
      %s112 = sphi 0, %s98
    $region4: #{tpu_custom_call.1} parent=1 // loop_header_branch
      %17 = sbr.rel (%p15) target = $region8
    $region5: #{tpu_custom_call.1} parent=1 // loop_body
      %s19 = ssub.s32 %s14, 1
      %s20 = ssub.s32 %s14, 2
      %s21 = sadd.s32 %s14, 1
      %s23 = sadd.s32 %s22, 1
      %p26 = scmp.eq.s32.totalorder %s14, 3
      %p27 = scmp.ne.s32.totalorder %s22, %s24
      %p28 = scmp.eq.s32.totalorder %s14, 0
      %p29 = por %p27, %p28
      %p30 = scmp.ne.s32.totalorder %s22, %s24
      %p31 = scmp.eq.s32.totalorder %s19, 3
      %p32 = por %p30, %p31
      %p33 = scmp.ne.s32.totalorder %s24, %s25
      %p34 = scmp.eq.s32.totalorder %s19, 0
      %p35 = por %p33, %p34
      %p36 = scmp.ne.s32.totalorder %s24, %s25
      %p37 = scmp.eq.s32.totalorder %s20, 3
      %p38 = por %p36, %p37
      %p40 = scmp.ne.s32.totalorder %s25, %s39
      %p41 = scmp.eq.s32.totalorder %s20, 0
      %p42 = por %p40, %p41
      %s43 = ssub.s32 %s14, %s21
      %p44 = scmp.eq.s32.totalorder %s43, 0
      %s46 = sadd.s32 %s45, 1
      %s47 = scalar_select %p44, %s45, %s46
      %p50 = pneg %p44
      %p51 = scmp.eq.s32.totalorder %s14, 3
      %p52 = por %p50, %p51
      %p53 = scmp.ne.s32.totalorder %s45, %s48
      %p54 = scmp.eq.s32.totalorder %s14, 0
      %p55 = por %p53, %p54
      %p56 = scmp.ne.s32.totalorder %s45, %s48
      %p57 = scmp.eq.s32.totalorder %s19, 3
      %p58 = por %p56, %p57
      %p59 = scmp.ne.s32.totalorder %s48, %s49
      %p60 = scmp.eq.s32.totalorder %s19, 0
      %p61 = por %p59, %p60
      %p62 = scmp.ne.s32.totalorder %s48, %s49
      %p63 = scmp.eq.s32.totalorder %s20, 3
      %p64 = por %p62, %p63
      %p66 = scmp.ne.s32.totalorder %s49, %s65
      %p67 = scmp.eq.s32.totalorder %s20, 0
      %p68 = por %p66, %p67
      %s69 = ssub.s32 %s14, %s21
      %p70 = scmp.eq.s32.totalorder %s69, 0
      %s72 = sadd.s32 %s71, 1
      %s73 = scalar_select %p70, %s71, %s72
      %p76 = pneg %p70
      %p77 = scmp.eq.s32.totalorder %s14, 3
      %p78 = por %p76, %p77
      %p79 = scmp.ne.s32.totalorder %s71, %s74
      %p80 = scmp.eq.s32.totalorder %s14, 0
      %p81 = por %p79, %p80
      %p82 = scmp.ne.s32.totalorder %s71, %s74
      %p83 = scmp.eq.s32.totalorder %s19, 3
      %p84 = por %p82, %p83
      %p85 = scmp.ne.s32.totalorder %s74, %s75
      %p86 = scmp.eq.s32.totalorder %s19, 0
      %p87 = por %p85, %p86
      %p88 = scmp.ne.s32.totalorder %s74, %s75
      %p89 = scmp.eq.s32.totalorder %s20, 3
      %p90 = por %p88, %p89
      %p92 = scmp.ne.s32.totalorder %s75, %s91
      %p93 = scmp.eq.s32.totalorder %s20, 0
      %p94 = por %p92, %p93
      %s96 = sadd.s32 %s95, 1
      %p99 = scmp.eq.s32.totalorder %s14, 3
      %p100 = scmp.ne.s32.totalorder %s95, %s97
      %p101 = scmp.eq.s32.totalorder %s14, 0
      %p102 = por %p100, %p101
      %p103 = scmp.ne.s32.totalorder %s95, %s97
      %p104 = scmp.eq.s32.totalorder %s19, 3
      %p105 = por %p103, %p104
      %p106 = scmp.ne.s32.totalorder %s97, %s98
      %p107 = scmp.eq.s32.totalorder %s19, 0
      %p108 = por %p106, %p107
      %p109 = scmp.ne.s32.totalorder %s97, %s98
      %p110 = scmp.eq.s32.totalorder %s20, 3
      %p111 = por %p109, %p110
      %p113 = scmp.ne.s32.totalorder %s98, %s112
      %p114 = scmp.eq.s32.totalorder %s20, 0
      %p115 = por %p113, %p114
      %p116 = scmp.le.s32.totalorder 1, %s14
      %p117 = scmp.lt.s32.totalorder %s14, 5
      %p118 = pnand %p116, %p117
      %p119 = pneg %p118
      // Predicated region
      $region9: #{tpu_custom_call.1} parent=5 // pred_check
        _
      $region10: #{tpu_custom_call.1} parent=5 // pred_check_branch
        %121 = sbr.rel (%p118) target = $region12
      $region11: #{tpu_custom_call.1} parent=5 // pred_region
        %s122 = ssub.s32 %s14, 1
        // Predicated region
        $region13: #{tpu_custom_call.1} parent=11 // pred_check
          %p123 = pneg %p35
        $region14: #{tpu_custom_call.1} parent=11 // pred_check_branch
          %125 = sbr.rel (%p123) target = $region16
        $region15: #{tpu_custom_call.1} parent=11 // pred_region
          %127 = vsyncadd [#allocation4], 0
          %s129 = sshll.u32 %s0, 4
          %s130 = int_to_ptr.hbm [resolvable:$true] %s129
          %s131 = sshll.u32 [#allocation3], 4
          %s132 = int_to_ptr.vmem [resolvable:$true] %s131
          %134 = dma.hbm_to_vmem [thread:$0]  %s130, 16, %s132, [#allocation4]
        $region16: #{tpu_custom_call.1} parent=11 // pred_fallthru
          _
      $region12: #{tpu_custom_call.1} parent=5 // pred_fallthru
        _
      %p135 = scmp.lt.s32.totalorder %s14, 4
      // Predicated region
      $region17: #{tpu_custom_call.1} parent=5 // pred_check
        %p136 = pneg %p135
      $region18: #{tpu_custom_call.1} parent=5 // pred_check_branch
        %138 = sbr.rel (%p136) target = $region20
      $region19: #{tpu_custom_call.1} parent=5 // pred_region
        // Predicated region
        $region21: #{tpu_custom_call.1} parent=19 // pred_check
          %p139 = pneg %p55
        $region22: #{tpu_custom_call.1} parent=19 // pred_check_branch
          %141 = sbr.rel (%p139) target = $region24
        $region23: #{tpu_custom_call.1} parent=19 // pred_region
          %s142 = sand.u32 %s14, 1
          %s143 = scalar_lea.sflag [#allocation7], %s142
          %s144 = sand.u32 %s45, 1
          %s145 = smul.addr %s144, 256
          %s146 = scalar_lea.vmem [#allocation6], %s145
          %s147 = smul.u32 2, %s14
          %149 = vsyncadd %s143, 0
          %s150 = smul.addr %s147, 8
          %s151 = scalar_lea.hbm %s1, %s150
          %s152 = sshll.u32 %s151, 4
          %s153 = int_to_ptr.hbm [resolvable:$true] %s152
          %s154 = sshll.u32 %s146, 4
          %s155 = int_to_ptr.vmem [resolvable:$true] %s154
          %160 = dma.hbm_to_vmem [thread:$0]  %s153, 4096, %s155, %s143, 1024, 256, 16
        $region24: #{tpu_custom_call.1} parent=19 // pred_fallthru
          _
        // Predicated region
        $region25: #{tpu_custom_call.1} parent=19 // pred_check
          %p161 = pneg %p81
        $region26: #{tpu_custom_call.1} parent=19 // pred_check_branch
          %163 = sbr.rel (%p161) target = $region28
        $region27: #{tpu_custom_call.1} parent=19 // pred_region
          %s164 = sand.u32 %s14, 1
          %s165 = scalar_lea.sflag [#allocation7], %s164
          %s166 = sand.u32 %s71, 1
          %s167 = smul.addr %s166, 2
          %s168 = scalar_lea.vmem [#allocation8], %s167
          %s169 = smul.u32 2, %s14
          %171 = vsyncadd %s165, 0
          %s172 = scalar_lea.hbm %s2, %s169
          %s174 = sshll.u32 %s172, 4
          %s175 = int_to_ptr.hbm [resolvable:$true] %s174
          %s176 = sshll.u32 %s168, 4
          %s177 = int_to_ptr.vmem [resolvable:$true] %s176
          %179 = dma.hbm_to_vmem [thread:$0]  %s175, 32, %s177, %s165
        $region28: #{tpu_custom_call.1} parent=19 // pred_fallthru
          _
      $region20: #{tpu_custom_call.1} parent=5 // pred_fallthru
        _
      %p180 = scmp.le.s32.totalorder 1, %s14
      %p181 = scmp.lt.s32.totalorder %s14, 5
      %p182 = pnand %p180, %p181
      %p183 = pneg %p182
      // Predicated region
      $region29: #{tpu_custom_call.1} parent=5 // pred_check
        _
      $region30: #{tpu_custom_call.1} parent=5 // pred_check_branch
        %185 = sbr.rel (%p182) target = $region32
      $region31: #{tpu_custom_call.1} parent=5 // pred_region
        %s186 = ssub.s32 %s14, 1
        // Predicated region
        $region33: #{tpu_custom_call.1} parent=31 // pred_check
          %p187 = pneg %p35
        $region34: #{tpu_custom_call.1} parent=31 // pred_check_branch
          %189 = sbr.rel (%p187) target = $region36
        $region35: #{tpu_custom_call.1} parent=31 // pred_region
          %191 = dma.done [#allocation4], 16
        $region36: #{tpu_custom_call.1} parent=31 // pred_fallthru
          _
        %s192 = sand.u32 %s19, 1
        %s193 = scalar_lea.sflag [#allocation7], %s192
        %s194 = sand.u32 %s48, 1
        %s195 = smul.addr %s194, 256
        %s196 = scalar_lea.vmem [#allocation6], %s195
        // Predicated region
        $region37: #{tpu_custom_call.1} parent=31 // pred_check
          %p197 = pneg %p61
        $region38: #{tpu_custom_call.1} parent=31 // pred_check_branch
          %199 = sbr.rel (%p197) target = $region40
        $region39: #{tpu_custom_call.1} parent=31 // pred_region
          %201 = dma.done %s193, 4096
        $region40: #{tpu_custom_call.1} parent=31 // pred_fallthru
          _
        %s202 = sand.u32 %s19, 1
        %s203 = scalar_lea.sflag [#allocation7], %s202
        %s204 = sand.u32 %s74, 1
        %s205 = smul.addr %s204, 2
        %s206 = scalar_lea.vmem [#allocation8], %s205
        // Predicated region
        $region41: #{tpu_custom_call.1} parent=31 // pred_check
          %p207 = pneg %p87
        $region42: #{tpu_custom_call.1} parent=31 // pred_check_branch
          %209 = sbr.rel (%p207) target = $region44
        $region43: #{tpu_custom_call.1} parent=31 // pred_region
          %211 = dma.done %s203, 32
        $region44: #{tpu_custom_call.1} parent=31 // pred_fallthru
          _
        %p212 = pneg %p35
        %p213 = pneg %p32
        %s214 = sand.u32 %s19, 1
        %s215 = scalar_lea.sflag [#allocation7], %s214
        %s216 = sand.u32 %s48, 1
        %s217 = smul.addr %s216, 256
        %s218 = scalar_lea.vmem [#allocation6], %s217
        %p219 = pneg %p61
        %p220 = pneg %p58
        %s221 = sand.u32 %s19, 1
        %s222 = scalar_lea.sflag [#allocation7], %s221
        %s223 = sand.u32 %s74, 1
        %s224 = smul.addr %s223, 2
        %s225 = scalar_lea.vmem [#allocation8], %s224
        %p226 = pneg %p87
        %p227 = pneg %p84
        %p228 = pneg %p108
        %p229 = pneg %p105
        %s230 = smul.u32 2, %s19
        %s231 = smul.u32 2, %s19
        %p232 = scmp.eq.s32.totalorder %s19, 0
        // Predicated region
        $region45: #{tpu_custom_call.1} parent=31 // pred_check
          %p233 = pneg %p232
        $region46: #{tpu_custom_call.1} parent=31 // pred_check_branch
          %235 = sbr.rel (%p233) target = $region48
        $region47: #{tpu_custom_call.1} parent=31 // pred_region
          %vm236 = vcmask 0
          %237 = vst.msk [vmem:[#allocation2] sm:$0x1] %vm236, 0.0
        $region48: #{tpu_custom_call.1} parent=31 // pred_fallthru
          _
        %v238 = vld [vmem:[#allocation3] sm:$0x1]
        %v239 = vld [vmem:[%s196] sm:$0xff]
        %v240 = vld [vmem:[%s196 + $0x8] sm:$0xff]
        %v241 = vld [vmem:[%s196 + $0x10] sm:$0xff]
        %v242 = vld [vmem:[%s196 + $0x18] sm:$0xff]
        %v243 = vld [vmem:[%s196 + $0x20] sm:$0xff]
        %v244 = vld [vmem:[%s196 + $0x28] sm:$0xff]
        %v245 = vld [vmem:[%s196 + $0x30] sm:$0xff]
        %v246 = vld [vmem:[%s196 + $0x38] sm:$0xff]
        %v247 = vld [vmem:[%s196 + $0x40] sm:$0xff]
        %v248 = vld [vmem:[%s196 + $0x48] sm:$0xff]
        %v249 = vld [vmem:[%s196 + $0x50] sm:$0xff]
        %v250 = vld [vmem:[%s196 + $0x58] sm:$0xff]
        %v251 = vld [vmem:[%s196 + $0x60] sm:$0xff]
        %v252 = vld [vmem:[%s196 + $0x68] sm:$0xff]
        %v253 = vld [vmem:[%s196 + $0x70] sm:$0xff]
        %v254 = vld [vmem:[%s196 + $0x78] sm:$0xff]
        %v255 = vld [vmem:[%s196 + $0x80] sm:$0xff]
        %v256 = vld [vmem:[%s196 + $0x88] sm:$0xff]
        %v257 = vld [vmem:[%s196 + $0x90] sm:$0xff]
        %v258 = vld [vmem:[%s196 + $0x98] sm:$0xff]
        %v259 = vld [vmem:[%s196 + $0xa0] sm:$0xff]
        %v260 = vld [vmem:[%s196 + $0xa8] sm:$0xff]
        %v261 = vld [vmem:[%s196 + $0xb0] sm:$0xff]
        %v262 = vld [vmem:[%s196 + $0xb8] sm:$0xff]
        %v263 = vld [vmem:[%s196 + $0xc0] sm:$0xff]
        %v264 = vld [vmem:[%s196 + $0xc8] sm:$0xff]
        %v265 = vld [vmem:[%s196 + $0xd0] sm:$0xff]
        %v266 = vld [vmem:[%s196 + $0xd8] sm:$0xff]
        %v267 = vld [vmem:[%s196 + $0xe0] sm:$0xff]
        %v268 = vld [vmem:[%s196 + $0xe8] sm:$0xff]
        %v269 = vld [vmem:[%s196 + $0xf0] sm:$0xff]
        %v270 = vld [vmem:[%s196 + $0xf8] sm:$0xff]
        %271 = vmatpush.msra.mxu0 %v269
        %272 = vmatpush.msra.mxu0 %v267
        %273 = vmatpush.msra.mxu0 %v265
        %274 = vmatpush.msra.mxu0 %v263
        %275 = vmatpush.msra.mxu0 %v261
        %276 = vmatpush.msra.mxu0 %v259
        %277 = vmatpush.msra.mxu0 %v257
        %278 = vmatpush.msra.mxu0 %v255
        %279 = vmatpush.msra.mxu0 %v253
        %280 = vmatpush.msra.mxu0 %v251
        %281 = vmatpush.msra.mxu0 %v249
        %282 = vmatpush.msra.mxu0 %v247
        %283 = vmatpush.msra.mxu0 %v245
        %284 = vmatpush.msra.mxu0 %v243
        %285 = vmatpush.msra.mxu0 %v241
        %286 = vmatpush.msra.mxu0 %v239
        %287 = vmatmul.f32.gmra.mxu0 %v238
        %v288 = vpop.f32.mrf.mxu0
        %v289 = vadd.f32 0.0, %v288
        %290 = vdwg.mxu0
        %291 = vmatpush.msra.mxu0 %v270
        %292 = vmatpush.msra.mxu0 %v268
        %293 = vmatpush.msra.mxu0 %v266
        %294 = vmatpush.msra.mxu0 %v264
        %295 = vmatpush.msra.mxu0 %v262
        %296 = vmatpush.msra.mxu0 %v260
        %297 = vmatpush.msra.mxu0 %v258
        %298 = vmatpush.msra.mxu0 %v256
        %299 = vmatpush.msra.mxu0 %v254
        %300 = vmatpush.msra.mxu0 %v252
        %301 = vmatpush.msra.mxu0 %v250
        %302 = vmatpush.msra.mxu0 %v248
        %303 = vmatpush.msra.mxu0 %v246
        %304 = vmatpush.msra.mxu0 %v244
        %305 = vmatpush.msra.mxu0 %v242
        %306 = vmatpush.msra.mxu0 %v240
        %307 = vmatmul.f32.gmra.mxu0 %v238
        %v308 = vpop.f32.mrf.mxu0
        %v309 = vadd.f32 0.0, %v308
        %310 = vdwg.mxu0
        %v311 = vld [vmem:[%s206] sm:$0x3]
        %v313 = vperm.slane %v311, 0
        %v314 = vperm.slane %v311, 1
        %v317 = vsub.f32 %v289, %v313
        %v318 = vsub.f32 %v309, %v314
        %v319 = vld [vmem:[#allocation2] sm:$0x1]
        %v320 = vmul.f32 %v317, %v317
        %v321 = vmul.f32 %v318, %v318
        %vm322 = vcmask 1040384
        %v323 = vsel %vm322, %v320, 0.0
        %v324 = vsel %vm322, %v321, 0.0
        %v325 = vadd.f32 %v323, %v324
        %326 = vadd.xlane.f32.xlu0 %v325
        %v327 = vpop.xlane.xlu0 %326
        %v328 = vadd.f32 %v319, %v327
        %vm329 = vcmask 0
        %330 = vst.msk [vmem:[#allocation2] sm:$0x1] %vm329, %v328
        %p331 = scmp.eq.s32.totalorder %s19, 3
        // Predicated region
        $region49: #{tpu_custom_call.1} parent=31 // pred_check
          %p332 = pneg %p331
        $region50: #{tpu_custom_call.1} parent=31 // pred_check_branch
          %334 = sbr.rel (%p332) target = $region52
        $region51: #{tpu_custom_call.1} parent=31 // pred_region
          %v335 = vld [vmem:[#allocation2] sm:$0x1]
          %336 = vst.msk [vmem:[#allocation9] sm:$0x1] %vm329, %v335
        $region52: #{tpu_custom_call.1} parent=31 // pred_fallthru
          _
        // Predicated region
        $region53: #{tpu_custom_call.1} parent=31 // pred_check
          %p337 = pneg %p105
        $region54: #{tpu_custom_call.1} parent=31 // pred_check_branch
          %339 = sbr.rel (%p337) target = $region56
        $region55: #{tpu_custom_call.1} parent=31 // pred_region
          %341 = vsyncadd [#allocation5], 0
          %s343 = sshll.u32 [#allocation9], 4
          %s344 = int_to_ptr.vmem [resolvable:$true] %s343
          %s345 = sshll.u32 %s3, 4
          %s346 = int_to_ptr.hbm [resolvable:$true] %s345
          %348 = dma.vmem_to_hbm [thread:$0]  %s344, 16, %s346, [#allocation5]
        $region56: #{tpu_custom_call.1} parent=31 // pred_fallthru
          _
        // Predicated region
        $region57: #{tpu_custom_call.1} parent=31 // pred_check
          %p349 = pneg %p105
        $region58: #{tpu_custom_call.1} parent=31 // pred_check_branch
          %351 = sbr.rel (%p349) target = $region60
        $region59: #{tpu_custom_call.1} parent=31 // pred_region
          %353 = dma.done [#allocation5], 16
        $region60: #{tpu_custom_call.1} parent=31 // pred_fallthru
          _
      $region32: #{tpu_custom_call.1} parent=5 // pred_fallthru
        _
      %p354 = scmp.le.s32.totalorder 2, %s14
      // Predicated region
      $region61: #{tpu_custom_call.1} parent=5 // pred_check
        %p355 = pneg %p354
      $region62: #{tpu_custom_call.1} parent=5 // pred_check_branch
        %357 = sbr.rel (%p355) target = $region64
      $region63: #{tpu_custom_call.1} parent=5 // pred_region
        %s358 = ssub.s32 %s14, 2
      $region64: #{tpu_custom_call.1} parent=5 // pred_fallthru
        _
    $region6: #{tpu_custom_call.1} parent=1 // loop_footer
      %s18 = sadd.s32 1, %s14
    $region7: #{tpu_custom_call.1} parent=1 // loop_footer_branch
      %13 = sbr.rel target = $region3
    $region8: #{tpu_custom_call.1} parent=1 // loop_exit
      _
    %359 = vsyncpa [#allocation4], 1
    %s360 = scalar_lea.sflag [#allocation4], 1
    %361 = vsyncpa %s360, 1
    %362 = vsyncpa [#allocation7], 1
    %s363 = scalar_lea.sflag [#allocation7], 1
    %364 = vsyncpa %s363, 1
    %365 = vsyncpa [#allocation5], 1
    %s366 = scalar_lea.sflag [#allocation5], 1
    %367 = vsyncpa %s366, 1

</llo_original>
